<compile_context>
chip_gen: v6e
topology: v6e:2x2x1
jax: 0.10.0
libtpu: 0.0.40
codegen_flags: <defaults>
</compile_context>

<pallas_src>
import jax
import jax.numpy as jnp
from jax.experimental import pallas as pl
from jax.experimental.pallas import tpu as pltpu


def lstm_kernel(x_ref, pool_ref, wih_ref, whh_ref, b_ref, fcw_ref, fcb_ref,
                o_ref, xg_sc, hs_sc):
    H = whh_ref.shape[0]
    S = pool_ref.shape[0]
    SB = x_ref.shape[0]
    B = SB // S

    # (1) Input projection for ALL timesteps at once; bias broadcast folded in
    #     here, off the serial path.
    xg_sc[...] = (jnp.dot(x_ref[...], wih_ref[...],
                          preferred_element_type=jnp.float32)
                  + b_ref[...])                                   # (S*B, 4H)

    whh = whh_ref[...]                                            # hoisted load

    # (2) Serial recurrence: only h @ W_hh + gate nonlinearities per step.
    def step(t, carry):
        h, c = carry
        row = pl.multiple_of(t * B, B)
        g = xg_sc[pl.ds(row, B), :] + jnp.dot(
            h, whh, preferred_element_type=jnp.float32)           # (B, 4H)
        i_g = jax.nn.sigmoid(g[:, 0 * H:1 * H])
        f_g = jax.nn.sigmoid(g[:, 1 * H:2 * H])
        g_g = jnp.tanh(g[:, 2 * H:3 * H])
        o_g = jax.nn.sigmoid(g[:, 3 * H:4 * H])
        c = f_g * c + i_g * g_g
        h = o_g * jnp.tanh(c)
        hs_sc[pl.ds(row, B), :] = h
        return (h, c)

    zeros = jnp.zeros((B, H), jnp.float32)
    jax.lax.fori_loop(0, S, step, (zeros, zeros))

    # (3) Epilogue: masked mean pool (1/length already folded into pool_ref)
    #     + FC + tanh, one dense output store.
    pooled = jnp.dot(pool_ref[...], hs_sc[...],
                     preferred_element_type=jnp.float32)          # (S, H)
    o_ref[...] = jnp.tanh(
        jnp.dot(pooled, fcw_ref[...], preferred_element_type=jnp.float32)
        + fcb_ref[...])                                           # (S, O)


def lstm_classifier_forward(text, emb_table, w_ih, w_hh, b_ih, b_hh, fc_w, fc_b):
    S, B = text.shape
    E = emb_table.shape[1]
    H = w_hh.shape[1]
    O = fc_w.shape[0]

    # ---- glue: embedding gather, mask normalization, parameter layout ----
    x = emb_table[text].astype(jnp.float32).reshape(S * B, E)      # (S*B, E)
    mask = (text != 0).astype(jnp.float32)                         # (S, B)
    lengths = jnp.sum(mask, axis=1, keepdims=True)                 # (S, 1)
    # NOTE: matches the PyTorch module exactly: a row of all pad tokens would
    # divide by zero here, just like the reference.
    maskn = mask / lengths                                         # (S, B)
    # Block-diagonal pooling matrix: pool_w[s, s*B + b] = mask[s, b]/len[s],
    # so pool_w @ hs == masked mean over the LSTM batch dim per timestep.
    pool_w = (jnp.eye(S, dtype=jnp.float32)[:, :, None]
              * maskn[:, None, :]).reshape(S, S * B)               # (S, S*B)
    wih_t = jnp.transpose(w_ih)                                    # (E, 4H)
    whh_t = jnp.transpose(w_hh)                                    # (H, 4H)
    bias = (b_ih + b_hh)[None, :]                                  # (1, 4H)
    fcw_t = jnp.transpose(fc_w)                                    # (H, O)
    fcb = fc_b[None, :]                                            # (1, O)

    out = pl.pallas_call(
        lstm_kernel,
        out_shape=jax.ShapeDtypeStruct((S, O), jnp.float32),
        grid_spec=pltpu.PrefetchScalarGridSpec(
            num_scalar_prefetch=0,
            grid=(1,),
            in_specs=[
                pl.BlockSpec((S * B, E), lambda i: (0, 0)),
                pl.BlockSpec((S, S * B), lambda i: (0, 0)),
                pl.BlockSpec((E, 4 * H), lambda i: (0, 0)),
                pl.BlockSpec((H, 4 * H), lambda i: (0, 0)),
                pl.BlockSpec((1, 4 * H), lambda i: (0, 0)),
                pl.BlockSpec((H, O), lambda i: (0, 0)),
                pl.BlockSpec((1, O), lambda i: (0, 0)),
            ],
            out_specs=pl.BlockSpec((S, O), lambda i: (0, 0)),
            scratch_shapes=[
                pltpu.VMEM((S * B, 4 * H), jnp.float32),   # x @ W_ih + bias
                pltpu.VMEM((S * B, H), jnp.float32),       # all h_t
            ],
        ),
        compiler_params=pltpu.CompilerParams(
            dimension_semantics=("arbitrary",)),
    )(x, pool_w, wih_t, whh_t, bias, fcw_t, fcb)
    return out                                                     # (S, O)


def reference_forward(text, emb_table, w_ih, w_hh, b_ih, b_hh, fc_w, fc_b):
    """Pure-JAX reference mirroring the PyTorch forward exactly."""
    x = emb_table[text].astype(jnp.float32)              # (S, B, E)
    S, B, _ = x.shape
    H = w_hh.shape[1]

    def step(carry, x_t):
        h, c = carry
        gates = x_t @ w_ih.T + b_ih + h @ w_hh.T + b_hh
        i, f, g, o = jnp.split(gates, 4, axis=1)
        i = jax.nn.sigmoid(i)
        f = jax.nn.sigmoid(f)
        g = jnp.tanh(g)
        o = jax.nn.sigmoid(o)
        c = f * c + i * g
        h = o * jnp.tanh(c)
        return (h, c), h

    init = (jnp.zeros((B, H), jnp.float32), jnp.zeros((B, H), jnp.float32))
    _, outs = jax.lax.scan(step, init, x)                 # (S, B, H)

    mask = (text != 0).astype(jnp.float32)[:, :, None]    # (S, B, 1)
    sum_h = jnp.sum(outs * mask, axis=1)                  # (S, H)
    lengths = jnp.sum((text != 0).astype(jnp.float32), axis=1, keepdims=True)
    mean_h = sum_h / lengths
    return jnp.tanh(mean_h @ fc_w.T + fc_b)               # (S, O)


if __name__ == "__main__":
    # Small, deterministic configuration.
    VOCAB = 50
    E = 16      # embedding_dim
    H = 32      # hidden_dim
    O = 4       # output_dim
    S = 8       # text dim0 (LSTM time axis)
    B = 8       # text dim1 (LSTM batch axis, masked-mean-pooled)

    key = jax.random.PRNGKey(0)
    k_emb, k_ih, k_hh, k_bih, k_bhh, k_fw, k_fb, k_txt = jax.random.split(key, 8)

    emb_table = jax.random.normal(k_emb, (VOCAB, E), jnp.float32) * 0.5
    emb_table = emb_table.at[0].set(0.0)  # pad token embedding
    w_ih = jax.random.normal(k_ih, (4 * H, E), jnp.float32) * 0.1
    w_hh = jax.random.normal(k_hh, (4 * H, H), jnp.float32) * 0.1
    b_ih = jax.random.normal(k_bih, (4 * H,), jnp.float32) * 0.1
    b_hh = jax.random.normal(k_bhh, (4 * H,), jnp.float32) * 0.1
    fc_w = jax.random.normal(k_fw, (O, H), jnp.float32) * 0.1
    fc_b = jax.random.normal(k_fb, (O,), jnp.float32) * 0.1

    text = jax.random.randint(k_txt, (S, B), 1, VOCAB, dtype=jnp.int32)
    # add padding (token id 0) so the mask / length logic is exercised
    text = text.at[0, 6:].set(0)
    text = text.at[1, 4:].set(0)
    text = text.at[3, 5:].set(0)
    text = text.at[6, 2:].set(0)

    out = lstm_classifier_forward(text, emb_table, w_ih, w_hh,
                                  b_ih, b_hh, fc_w, fc_b)
    out = jax.block_until_ready(out)

    ref = jax.block_until_ready(
        reference_forward(text, emb_table, w_ih, w_hh, b_ih, b_hh, fc_w, fc_b))

    assert out.shape == (S, O), out.shape
    assert jnp.allclose(out, ref, atol=1e-2, rtol=1e-2), (out, ref)
    print("KERNEL_OK")
</pallas_src>

<mosaic_0001>
module attributes {stable_mosaic.version = 11 : i64} {
  func.func @lstm_kernel(%arg0: i32, %arg1: memref<64x16xf32, #tpu.memory_space<vmem>>, %arg2: memref<8x64xf32, #tpu.memory_space<vmem>>, %arg3: memref<16x128xf32, #tpu.memory_space<vmem>>, %arg4: memref<32x128xf32, #tpu.memory_space<vmem>>, %arg5: memref<1x128xf32, #tpu.memory_space<vmem>>, %arg6: memref<32x4xf32, #tpu.memory_space<vmem>>, %arg7: memref<1x4xf32, #tpu.memory_space<vmem>>, %arg8: memref<8x4xf32, #tpu.memory_space<vmem>>, %arg9: memref<64x128xf32, #tpu.memory_space<vmem>>, %arg10: memref<64x32xf32, #tpu.memory_space<vmem>>) attributes {dimension_semantics = [#tpu.dimension_semantics<arbitrary>], iteration_bounds = array<i64: 1>, scalar_prefetch = 0 : i64, scratch_operands = 2 : i64, tpu.core_type = #tpu.core_type<tc>, window_params = [{pipeline_mode = #tpu.pipeline_mode<synchronous>, transform_indices = @transform_0, window_bounds = array<i64: 64, 16>}, {pipeline_mode = #tpu.pipeline_mode<synchronous>, transform_indices = @transform_1, window_bounds = array<i64: 8, 64>}, {pipeline_mode = #tpu.pipeline_mode<synchronous>, transform_indices = @transform_2, window_bounds = array<i64: 16, 128>}, {pipeline_mode = #tpu.pipeline_mode<synchronous>, transform_indices = @transform_3, window_bounds = array<i64: 32, 128>}, {pipeline_mode = #tpu.pipeline_mode<synchronous>, transform_indices = @transform_4, window_bounds = array<i64: 1, 128>}, {pipeline_mode = #tpu.pipeline_mode<synchronous>, transform_indices = @transform_5, window_bounds = array<i64: 32, 4>}, {pipeline_mode = #tpu.pipeline_mode<synchronous>, transform_indices = @transform_6, window_bounds = array<i64: 1, 4>}, {pipeline_mode = #tpu.pipeline_mode<synchronous>, transform_indices = @transform_7, window_bounds = array<i64: 8, 4>}]} {
    %c0 = arith.constant 0 : index
    %c0_0 = arith.constant 0 : index
    %0 = vector.load %arg1[%c0, %c0_0] : memref<64x16xf32, #tpu.memory_space<vmem>>, vector<64x16xf32>
    %c0_1 = arith.constant 0 : index
    %c0_2 = arith.constant 0 : index
    %1 = vector.load %arg3[%c0_1, %c0_2] : memref<16x128xf32, #tpu.memory_space<vmem>>, vector<16x128xf32>
    %cst = arith.constant dense<0.000000e+00> : vector<64x128xf32>
    %2 = tpu.matmul %0, %1, %cst {dimension_numbers = #tpu.dot_dimension_numbers<[1], [0], [0], [1], [0, 0, 1, 1], [], []>} : vector<64x16xf32>, vector<16x128xf32>, vector<64x128xf32> -> vector<64x128xf32>
    %c0_3 = arith.constant 0 : index
    %c0_4 = arith.constant 0 : index
    %3 = vector.load %arg5[%c0_3, %c0_4] : memref<1x128xf32, #tpu.memory_space<vmem>>, vector<1x128xf32>
    %4 = vector.broadcast %3 : vector<1x128xf32> to vector<64x128xf32>
    %5 = arith.addf %2, %4 : vector<64x128xf32>
    %c0_5 = arith.constant 0 : index
    %c0_6 = arith.constant 0 : index
    %6 = vector.load %arg9[%c0_5, %c0_6] : memref<64x128xf32, #tpu.memory_space<vmem>>, vector<64x128xf32>
    tpu.vector_store %arg9[%c0_5, %c0_6], %5 {strides = array<i32>} : memref<64x128xf32, #tpu.memory_space<vmem>>, vector<64x128xf32>,
    %c0_7 = arith.constant 0 : index
    %c0_8 = arith.constant 0 : index
    %7 = vector.load %arg4[%c0_7, %c0_8] : memref<32x128xf32, #tpu.memory_space<vmem>>, vector<32x128xf32>
    %cst_9 = arith.constant 0.000000e+00 : f32
    %8 = vector.broadcast %cst_9 : f32 to vector<8x32xf32>
    %c0_i32 = arith.constant 0 : i32
    %c8_i32 = arith.constant 8 : i32
    %9 = arith.addi %c0_i32, %c8_i32 : i32
    %c1_i32 = arith.constant 1 : i32
    %10:2 = scf.for %arg11 = %c0_i32 to %9 step %c1_i32 iter_args(%arg12 = %8, %arg13 = %8) -> (vector<8x32xf32>, vector<8x32xf32>)  : i32 {
      %c8_i32_23 = arith.constant 8 : i32
      %21 = arith.muli %arg11, %c8_i32_23 : i32
      %22 = tpu.assume_multiple %21, 8 : i32
      %23 = arith.index_cast %22 : i32 to index
      %c0_24 = arith.constant 0 : index
      %24 = vector.load %arg9[%23, %c0_24] : memref<64x128xf32, #tpu.memory_space<vmem>>, vector<8x128xf32>
      %cst_25 = arith.constant dense<0.000000e+00> : vector<8x128xf32>
      %25 = tpu.matmul %arg12, %7, %cst_25 {dimension_numbers = #tpu.dot_dimension_numbers<[1], [0], [0], [1], [0, 0, 1, 1], [], []>} : vector<8x32xf32>, vector<32x128xf32>, vector<8x128xf32> -> vector<8x128xf32>
      %26 = arith.addf %24, %25 : vector<8x128xf32>
      %27 = vector.extract_strided_slice %26 {offsets = [0, 0], sizes = [8, 32], strides = [1, 1]} : vector<8x128xf32> to vector<8x32xf32>
      %28 = arith.negf %27 : vector<8x32xf32>
      %29 = math.exp %28 : vector<8x32xf32>
      %cst_26 = arith.constant 1.000000e+00 : f32
      %30 = vector.broadcast %cst_26 : f32 to vector<8x32xf32>
      %31 = arith.addf %30, %29 : vector<8x32xf32>
      %32 = arith.divf %30, %31 : vector<8x32xf32>
      %33 = vector.extract_strided_slice %26 {offsets = [0, 32], sizes = [8, 32], strides = [1, 1]} : vector<8x128xf32> to vector<8x32xf32>
      %34 = arith.negf %33 : vector<8x32xf32>
      %35 = math.exp %34 : vector<8x32xf32>
      %cst_27 = arith.constant 1.000000e+00 : f32
      %36 = vector.broadcast %cst_27 : f32 to vector<8x32xf32>
      %37 = arith.addf %36, %35 : vector<8x32xf32>
      %38 = arith.divf %36, %37 : vector<8x32xf32>
      %39 = vector.extract_strided_slice %26 {offsets = [0, 64], sizes = [8, 32], strides = [1, 1]} : vector<8x128xf32> to vector<8x32xf32>
      %40 = math.tanh %39 : vector<8x32xf32>
      %41 = vector.extract_strided_slice %26 {offsets = [0, 96], sizes = [8, 32], strides = [1, 1]} : vector<8x128xf32> to vector<8x32xf32>
      %42 = arith.negf %41 : vector<8x32xf32>
      %43 = math.exp %42 : vector<8x32xf32>
      %cst_28 = arith.constant 1.000000e+00 : f32
      %44 = vector.broadcast %cst_28 : f32 to vector<8x32xf32>
      %45 = arith.addf %44, %43 : vector<8x32xf32>
      %46 = arith.divf %44, %45 : vector<8x32xf32>
      %47 = arith.mulf %38, %arg13 : vector<8x32xf32>
      %48 = arith.mulf %32, %40 : vector<8x32xf32>
      %49 = arith.addf %47, %48 : vector<8x32xf32>
      %50 = math.tanh %49 : vector<8x32xf32>
      %51 = arith.mulf %46, %50 : vector<8x32xf32>
      %52 = arith.index_cast %22 : i32 to index
      %c0_29 = arith.constant 0 : index
      %53 = vector.load %arg10[%52, %c0_29] : memref<64x32xf32, #tpu.memory_space<vmem>>, vector<8x32xf32>
      tpu.vector_store %arg10[%52, %c0_29], %51 {strides = array<i32>} : memref<64x32xf32, #tpu.memory_space<vmem>>, vector<8x32xf32>,
      scf.yield %51, %49 : vector<8x32xf32>, vector<8x32xf32>
    }
    %c8_i32_10 = arith.constant 8 : i32
    %c0_11 = arith.constant 0 : index
    %c0_12 = arith.constant 0 : index
    %11 = vector.load %arg2[%c0_11, %c0_12] : memref<8x64xf32, #tpu.memory_space<vmem>>, vector<8x64xf32>
    %c0_13 = arith.constant 0 : index
    %c0_14 = arith.constant 0 : index
    %12 = vector.load %arg10[%c0_13, %c0_14] : memref<64x32xf32, #tpu.memory_space<vmem>>, vector<64x32xf32>
    %cst_15 = arith.constant dense<0.000000e+00> : vector<8x32xf32>
    %13 = tpu.matmul %11, %12, %cst_15 {dimension_numbers = #tpu.dot_dimension_numbers<[1], [0], [0], [1], [0, 0, 1, 1], [], []>} : vector<8x64xf32>, vector<64x32xf32>, vector<8x32xf32> -> vector<8x32xf32>
    %c0_16 = arith.constant 0 : index
    %c0_17 = arith.constant 0 : index
    %14 = vector.load %arg6[%c0_16, %c0_17] : memref<32x4xf32, #tpu.memory_space<vmem>>, vector<32x4xf32>
    %cst_18 = arith.constant dense<0.000000e+00> : vector<8x4xf32>
    %15 = tpu.matmul %13, %14, %cst_18 {dimension_numbers = #tpu.dot_dimension_numbers<[1], [0], [0], [1], [0, 0, 1, 1], [], []>} : vector<8x32xf32>, vector<32x4xf32>, vector<8x4xf32> -> vector<8x4xf32>
    %c0_19 = arith.constant 0 : index
    %c0_20 = arith.constant 0 : index
    %16 = vector.load %arg7[%c0_19, %c0_20] : memref<1x4xf32, #tpu.memory_space<vmem>>, vector<1x4xf32>
    %17 = vector.broadcast %16 : vector<1x4xf32> to vector<8x4xf32>
    %18 = arith.addf %15, %17 : vector<8x4xf32>
    %19 = math.tanh %18 : vector<8x4xf32>
    %c0_21 = arith.constant 0 : index
    %c0_22 = arith.constant 0 : index
    %20 = vector.load %arg8[%c0_21, %c0_22] : memref<8x4xf32, #tpu.memory_space<vmem>>, vector<8x4xf32>
    tpu.vector_store %arg8[%c0_21, %c0_22], %19 {strides = array<i32>} : memref<8x4xf32, #tpu.memory_space<vmem>>, vector<8x4xf32>,
    return
  }
  func.func @transform_0(%arg0: i32) -> (i32, i32) {
    %c0_i32 = arith.constant 0 : i32
    %c0_i32_0 = arith.constant 0 : i32
    %c0_i32_1 = arith.constant 0 : i32
    return %c0_i32, %c0_i32_0 : i32, i32
  }
  func.func @transform_1(%arg0: i32) -> (i32, i32) {
    %c0_i32 = arith.constant 0 : i32
    %c0_i32_0 = arith.constant 0 : i32
    %c0_i32_1 = arith.constant 0 : i32
    return %c0_i32, %c0_i32_0 : i32, i32
  }
  func.func @transform_2(%arg0: i32) -> (i32, i32) {
    %c0_i32 = arith.constant 0 : i32
    %c0_i32_0 = arith.constant 0 : i32
    %c0_i32_1 = arith.constant 0 : i32
    return %c0_i32, %c0_i32_0 : i32, i32
  }
  func.func @transform_3(%arg0: i32) -> (i32, i32) {
    %c0_i32 = arith.constant 0 : i32
    %c0_i32_0 = arith.constant 0 : i32
    %c0_i32_1 = arith.constant 0 : i32
    return %c0_i32, %c0_i32_0 : i32, i32
  }
  func.func @transform_4(%arg0: i32) -> (i32, i32) {
    %c0_i32 = arith.constant 0 : i32
    %c0_i32_0 = arith.constant 0 : i32
    %c0_i32_1 = arith.constant 0 : i32
    return %c0_i32, %c0_i32_0 : i32, i32
  }
  func.func @transform_5(%arg0: i32) -> (i32, i32) {
    %c0_i32 = arith.constant 0 : i32
    %c0_i32_0 = arith.constant 0 : i32
    %c0_i32_1 = arith.constant 0 : i32
    return %c0_i32, %c0_i32_0 : i32, i32
  }
  func.func @transform_6(%arg0: i32) -> (i32, i32) {
    %c0_i32 = arith.constant 0 : i32
    %c0_i32_0 = arith.constant 0 : i32
    %c0_i32_1 = arith.constant 0 : i32
    return %c0_i32, %c0_i32_0 : i32, i32
  }
  func.func @transform_7(%arg0: i32) -> (i32, i32) {
    %c0_i32 = arith.constant 0 : i32
    %c0_i32_0 = arith.constant 0 : i32
    %c0_i32_1 = arith.constant 0 : i32
    return %c0_i32, %c0_i32_0 : i32, i32
  }
}

</mosaic_0001>

<llo_original>
// kernel: tpu_custom_call.1
$region0: #{tpu_custom_call.1}
  #allocation0 [shape = 'u32[]', space=smem, size = 0x4, offset = 0x4, fixed_abs, tag = 'smem constant byte address 0x4 - core index']
  #allocation1 [shape = 'u32[144,128]{1,0:T(1,128)}', space=vmem, size = 0x12000, scoped, tag = 'internal scratch']
  #allocation2 [shape = 'f32[64,128]{1,0:T(8,128)}', space=vmem, size = 0x8000, scoped, tag = 'scratch operand']
  #allocation3 [shape = 'f32[64,32]{1,0:T(8,128)}', space=vmem, size = 0x8000, scoped, tag = 'scratch operand']
  %s0 = inlined_call_operand.vmem [shape: f32[64,16], index: 0, kind: input, shape index: {}]
  %s1 = inlined_call_operand.vmem [shape: f32[8,64], index: 1, kind: input, shape index: {}]
  %s2 = inlined_call_operand.vmem [shape: f32[16,128], index: 2, kind: input, shape index: {}]
  %s3 = inlined_call_operand.vmem [shape: f32[32,128], index: 3, kind: input, shape index: {}]
  %s4 = inlined_call_operand.vmem [shape: f32[1,128], index: 4, kind: input, shape index: {}]
  %s5 = inlined_call_operand.vmem [shape: f32[32,4], index: 5, kind: input, shape index: {}]
  %s6 = inlined_call_operand.vmem [shape: f32[1,4], index: 6, kind: input, shape index: {}]
  %s7 = inlined_call_operand.vmem [shape: f32[8,4], index: 7, kind: output, shape index: {}]
  %s8 = sld [smem:[#allocation0]]
  $region45: #{tpu_custom_call.1} parent=0
    _
  %s10 = ssub.s32 1, %s8
  %s11 = scalar_select 0, %s10, %s8
  // Predicated region
  $region2: #{tpu_custom_call.1} parent=0 // pred_check
    _
  $region3: #{tpu_custom_call.1} parent=0 // pred_check_branch
    %13 = sbr.rel (0) target = $region5
  $region4: #{tpu_custom_call.1} parent=0 // pred_region
    _
  $region5: #{tpu_custom_call.1} parent=0 // pred_fallthru
    _
  // Predicated region
  $region6: #{tpu_custom_call.1} parent=0 // pred_check
    _
  $region7: #{tpu_custom_call.1} parent=0 // pred_check_branch
    %15 = sbr.rel (0) target = $region9
  $region8: #{tpu_custom_call.1} parent=0 // pred_region
    _
  $region9: #{tpu_custom_call.1} parent=0 // pred_fallthru
    _
  // Predicated region
  $region10: #{tpu_custom_call.1} parent=0 // pred_check
    _
  $region11: #{tpu_custom_call.1} parent=0 // pred_check_branch
    %17 = sbr.rel (0) target = $region13
  $region12: #{tpu_custom_call.1} parent=0 // pred_region
    _
  $region13: #{tpu_custom_call.1} parent=0 // pred_fallthru
    _
  // Predicated region
  $region14: #{tpu_custom_call.1} parent=0 // pred_check
    _
  $region15: #{tpu_custom_call.1} parent=0 // pred_check_branch
    %19 = sbr.rel (0) target = $region17
  $region16: #{tpu_custom_call.1} parent=0 // pred_region
    _
  $region17: #{tpu_custom_call.1} parent=0 // pred_fallthru
    _
  // Predicated region
  $region18: #{tpu_custom_call.1} parent=0 // pred_check
    _
  $region19: #{tpu_custom_call.1} parent=0 // pred_check_branch
    %21 = sbr.rel (0) target = $region21
  $region20: #{tpu_custom_call.1} parent=0 // pred_region
    _
  $region21: #{tpu_custom_call.1} parent=0 // pred_fallthru
    _
  // Predicated region
  $region22: #{tpu_custom_call.1} parent=0 // pred_check
    _
  $region23: #{tpu_custom_call.1} parent=0 // pred_check_branch
    %23 = sbr.rel (0) target = $region25
  $region24: #{tpu_custom_call.1} parent=0 // pred_region
    _
  $region25: #{tpu_custom_call.1} parent=0 // pred_fallthru
    _
  // Predicated region
  $region26: #{tpu_custom_call.1} parent=0 // pred_check
    _
  $region27: #{tpu_custom_call.1} parent=0 // pred_check_branch
    %25 = sbr.rel (0) target = $region29
  $region28: #{tpu_custom_call.1} parent=0 // pred_region
    _
  $region29: #{tpu_custom_call.1} parent=0 // pred_fallthru
    _
  %v26 = vld [vmem:[%s0] sm:$0xff]
  %v27 = vld [vmem:[%s0 + $0x8] sm:$0xff]
  %v28 = vld [vmem:[%s0 + $0x10] sm:$0xff]
  %v29 = vld [vmem:[%s0 + $0x18] sm:$0xff]
  %v30 = vld [vmem:[%s0 + $0x20] sm:$0xff]
  %v31 = vld [vmem:[%s0 + $0x28] sm:$0xff]
  %v32 = vld [vmem:[%s0 + $0x30] sm:$0xff]
  %v33 = vld [vmem:[%s0 + $0x38] sm:$0xff]
  %v34 = vld [vmem:[%s2] sm:$0xff]
  %v35 = vld [vmem:[%s2 + $0x8] sm:$0xff]
  %v36 = vld [vmem:[%s4] sm:$0x1]
  %v38 = vlaneseq
  %v39 = vshrl.u32 %v38, 7
  %v40 = vsub.s32 0, %v39
  %v41 = vrot.slane %v36, %v40
  %vm43 = vcmask 130048
  %v45 = vsel %vm43, %v26, 0
  %v48 = vsel %vm43, %v27, 0
  %v51 = vsel %vm43, %v28, 0
  %v54 = vsel %vm43, %v29, 0
  %v57 = vsel %vm43, %v30, 0
  %v60 = vsel %vm43, %v31, 0
  %v63 = vsel %vm43, %v32, 0
  %v66 = vsel %vm43, %v33, 0
  %68 = vmatprep.subr.mxu0 0.0
  %69 = vmatpush1.msra.mxu0 0.0
  %70 = vmatprep.subr.mxu0 0.0
  %71 = vmatpush1.msra.mxu0 0.0
  %72 = vmatprep.subr.mxu0 0.0
  %73 = vmatpush1.msra.mxu0 0.0
  %74 = vmatprep.subr.mxu0 0.0
  %75 = vmatpush1.msra.mxu0 0.0
  %76 = vmatprep.subr.mxu0 0.0
  %77 = vmatpush1.msra.mxu0 0.0
  %78 = vmatprep.subr.mxu0 0.0
  %79 = vmatpush1.msra.mxu0 0.0
  %80 = vmatprep.subr.mxu0 0.0
  %81 = vmatpush1.msra.mxu0 0.0
  %82 = vmatprep.subr.mxu0 0.0
  %83 = vmatpush1.msra.mxu0 0.0
  %84 = vmatprep.subr.mxu0 0.0
  %85 = vmatpush1.msra.mxu0 0.0
  %86 = vmatprep.subr.mxu0 0.0
  %87 = vmatpush1.msra.mxu0 0.0
  %88 = vmatprep.subr.mxu0 0.0
  %89 = vmatpush1.msra.mxu0 0.0
  %90 = vmatprep.subr.mxu0 0.0
  %91 = vmatpush1.msra.mxu0 0.0
  %92 = vmatprep.subr.mxu0 0.0
  %93 = vmatpush1.msra.mxu0 0.0
  %94 = vmatprep.subr.mxu0 0.0
  %95 = vmatpush1.msra.mxu0 0.0
  %96 = vmatprep.subr.mxu0 0.0
  %97 = vmatpush1.msra.mxu0 %v35
  %98 = vmatprep.subr.mxu0 0.0
  %99 = vmatpush1.msra.mxu0 %v34
  %100 = vmatprep.subr.mxu0 0.0
  %101 = vmatpush2.msra.mxu0 0.0
  %102 = vmatprep.subr.mxu0 0.0
  %103 = vmatpush2.msra.mxu0 0.0
  %104 = vmatprep.subr.mxu0 0.0
  %105 = vmatpush2.msra.mxu0 0.0
  %106 = vmatprep.subr.mxu0 0.0
  %107 = vmatpush2.msra.mxu0 0.0
  %108 = vmatprep.subr.mxu0 0.0
  %109 = vmatpush2.msra.mxu0 0.0
  %110 = vmatprep.subr.mxu0 0.0
  %111 = vmatpush2.msra.mxu0 0.0
  %112 = vmatprep.subr.mxu0 0.0
  %113 = vmatpush2.msra.mxu0 0.0
  %114 = vmatprep.subr.mxu0 0.0
  %115 = vmatpush2.msra.mxu0 0.0
  %116 = vmatprep.subr.mxu0 0.0
  %117 = vmatpush2.msra.mxu0 0.0
  %118 = vmatprep.subr.mxu0 0.0
  %119 = vmatpush2.msra.mxu0 0.0
  %120 = vmatprep.subr.mxu0 0.0
  %121 = vmatpush2.msra.mxu0 0.0
  %122 = vmatprep.subr.mxu0 0.0
  %123 = vmatpush2.msra.mxu0 0.0
  %124 = vmatprep.subr.mxu0 0.0
  %125 = vmatpush2.msra.mxu0 0.0
  %126 = vmatprep.subr.mxu0 0.0
  %127 = vmatpush2.msra.mxu0 0.0
  %128 = vmatprep.subr.mxu0 0.0
  %129 = vmatpush2.msra.mxu0 0.0
  %130 = vmatprep.subr.mxu0 0.0
  %131 = vmatpush2.msra.mxu0 0.0
  %132 = vmatprep.mubr.f32.mxu0 0.0
  %133 = vmatmul.mubr.f32.gmra.mxu0 %v45
  %v134 = vpop.f32.mrf.mxu0
  %v135 = vadd.f32 %v41, %v134
  %v136 = vpop.f32.mrf.mxu0
  %137 = vmatprep.mubr.f32.mxu0 0.0
  %138 = vmatmul.mubr.f32.gmra.mxu0 %v48
  %v139 = vpop.f32.mrf.mxu0
  %v140 = vadd.f32 %v41, %v139
  %v141 = vpop.f32.mrf.mxu0
  %142 = vmatprep.mubr.f32.mxu0 0.0
  %143 = vmatmul.mubr.f32.gmra.mxu0 %v51
  %v144 = vpop.f32.mrf.mxu0
  %v145 = vadd.f32 %v41, %v144
  %v146 = vpop.f32.mrf.mxu0
  %147 = vmatprep.mubr.f32.mxu0 0.0
  %148 = vmatmul.mubr.f32.gmra.mxu0 %v54
  %v149 = vpop.f32.mrf.mxu0
  %v150 = vadd.f32 %v41, %v149
  %v151 = vpop.f32.mrf.mxu0
  %152 = vmatprep.mubr.f32.mxu0 0.0
  %153 = vmatmul.mubr.f32.gmra.mxu0 %v57
  %v154 = vpop.f32.mrf.mxu0
  %v155 = vadd.f32 %v41, %v154
  %v156 = vpop.f32.mrf.mxu0
  %157 = vmatprep.mubr.f32.mxu0 0.0
  %158 = vmatmul.mubr.f32.gmra.mxu0 %v60
  %v159 = vpop.f32.mrf.mxu0
  %v160 = vadd.f32 %v41, %v159
  %v161 = vpop.f32.mrf.mxu0
  %162 = vmatprep.mubr.f32.mxu0 0.0
  %163 = vmatmul.mubr.f32.gmra.mxu0 %v63
  %v164 = vpop.f32.mrf.mxu0
  %v165 = vadd.f32 %v41, %v164
  %v166 = vpop.f32.mrf.mxu0
  %167 = vmatprep.mubr.f32.mxu0 0.0
  %168 = vmatmul.mubr.f32.gmra.mxu0 %v66
  %v169 = vpop.f32.mrf.mxu0
  %v170 = vadd.f32 %v41, %v169
  %v171 = vpop.f32.mrf.mxu0
  %172 = vdwg.mxu0
  %173 = vst [vmem:[#allocation2] sm:$0xff] %v135
  %174 = vst [vmem:[#allocation2 + $0x8] sm:$0xff] %v140
  %175 = vst [vmem:[#allocation2 + $0x10] sm:$0xff] %v145
  %176 = vst [vmem:[#allocation2 + $0x18] sm:$0xff] %v150
  %177 = vst [vmem:[#allocation2 + $0x20] sm:$0xff] %v155
  %178 = vst [vmem:[#allocation2 + $0x28] sm:$0xff] %v160
  %179 = vst [vmem:[#allocation2 + $0x30] sm:$0xff] %v165
  %180 = vst [vmem:[#allocation2 + $0x38] sm:$0xff] %v170
  %v181 = vld [vmem:[%s3] sm:$0xff]
  %v182 = vld [vmem:[%s3 + $0x8] sm:$0xff]
  %v183 = vld [vmem:[%s3 + $0x10] sm:$0xff]
  %v184 = vld [vmem:[%s3 + $0x18] sm:$0xff]
  loop: start=0, step=1, limit=8
  $region30: #{tpu_custom_call.1} parent=0 // loop_pre_header
    _
  $region31: #{tpu_custom_call.1} parent=0 // loop_header
    %s186 = sphi 0, %s190
    %p187 = scmp.ge.s32.totalorder %s186, 8
    %v191 = vphi 0.0, %v296
    %v192 = vphi 0.0, %v290
  $region32: #{tpu_custom_call.1} parent=0 // loop_header_branch
    %189 = sbr.rel (%p187) target = $region36
  $region33: #{tpu_custom_call.1} parent=0 // loop_body
    %s193 = smul.u32 %s186, 8
    %s194 = scalar_lea.vmem [#allocation2], %s193
    %v195 = vld [vmem:[%s194] sm:$0xff]
    %197 = vrot.lane.b32.xlu0 %v191, 32
    %v198 = vpop.permute.xlu0 %197
    %vm199 = vcmask 261120
    %v200 = vsel %vm199, %v198, 0
    %202 = vmatprep.subr.mxu0 0.0
    %203 = vmatpush1.msra.mxu0 0.0
    %204 = vmatprep.subr.mxu0 0.0
    %205 = vmatpush1.msra.mxu0 0.0
    %206 = vmatprep.subr.mxu0 0.0
    %207 = vmatpush1.msra.mxu0 0.0
    %208 = vmatprep.subr.mxu0 0.0
    %209 = vmatpush1.msra.mxu0 0.0
    %210 = vmatprep.subr.mxu0 0.0
    %211 = vmatpush1.msra.mxu0 0.0
    %212 = vmatprep.subr.mxu0 0.0
    %213 = vmatpush1.msra.mxu0 0.0
    %214 = vmatprep.subr.mxu0 0.0
    %215 = vmatpush1.msra.mxu0 0.0
    %216 = vmatprep.subr.mxu0 0.0
    %217 = vmatpush1.msra.mxu0 0.0
    %218 = vmatprep.subr.mxu0 0.0
    %219 = vmatpush1.msra.mxu0 0.0
    %220 = vmatprep.subr.mxu0 0.0
    %221 = vmatpush1.msra.mxu0 0.0
    %222 = vmatprep.subr.mxu0 0.0
    %223 = vmatpush1.msra.mxu0 0.0
    %224 = vmatprep.subr.mxu0 0.0
    %225 = vmatpush1.msra.mxu0 0.0
    %226 = vmatprep.subr.mxu0 0.0
    %227 = vmatpush1.msra.mxu0 %v184
    %228 = vmatprep.subr.mxu0 0.0
    %229 = vmatpush1.msra.mxu0 %v183
    %230 = vmatprep.subr.mxu0 0.0
    %231 = vmatpush1.msra.mxu0 %v182
    %232 = vmatprep.subr.mxu0 0.0
    %233 = vmatpush1.msra.mxu0 %v181
    %234 = vmatprep.subr.mxu0 0.0
    %235 = vmatpush2.msra.mxu0 0.0
    %236 = vmatprep.subr.mxu0 0.0
    %237 = vmatpush2.msra.mxu0 0.0
    %238 = vmatprep.subr.mxu0 0.0
    %239 = vmatpush2.msra.mxu0 0.0
    %240 = vmatprep.subr.mxu0 0.0
    %241 = vmatpush2.msra.mxu0 0.0
    %242 = vmatprep.subr.mxu0 0.0
    %243 = vmatpush2.msra.mxu0 0.0
    %244 = vmatprep.subr.mxu0 0.0
    %245 = vmatpush2.msra.mxu0 0.0
    %246 = vmatprep.subr.mxu0 0.0
    %247 = vmatpush2.msra.mxu0 0.0
    %248 = vmatprep.subr.mxu0 0.0
    %249 = vmatpush2.msra.mxu0 0.0
    %250 = vmatprep.subr.mxu0 0.0
    %251 = vmatpush2.msra.mxu0 0.0
    %252 = vmatprep.subr.mxu0 0.0
    %253 = vmatpush2.msra.mxu0 0.0
    %254 = vmatprep.subr.mxu0 0.0
    %255 = vmatpush2.msra.mxu0 0.0
    %256 = vmatprep.subr.mxu0 0.0
    %257 = vmatpush2.msra.mxu0 0.0
    %258 = vmatprep.subr.mxu0 0.0
    %259 = vmatpush2.msra.mxu0 0.0
    %260 = vmatprep.subr.mxu0 0.0
    %261 = vmatpush2.msra.mxu0 0.0
    %262 = vmatprep.subr.mxu0 0.0
    %263 = vmatpush2.msra.mxu0 0.0
    %264 = vmatprep.subr.mxu0 0.0
    %265 = vmatpush2.msra.mxu0 0.0
    %266 = vmatprep.mubr.f32.mxu0 0.0
    %267 = vmatmul.mubr.f32.gmra.mxu0 %v200
    %v268 = vpop.f32.mrf.mxu0
    %v269 = vadd.f32 0.0, %v268
    %v270 = vpop.f32.mrf.mxu0
    %271 = vdwg.mxu0
    %v272 = vadd.f32 %v195, %v269
    %v273 = vxor.u32 %v272, 2147483648
    %v274 = vmul.f32 %v273, 1.442695
    %v275 = vpow.pop %v274
    %v276 = vadd.f32 %v275, 1.0
    %v277 = vrcp.pop %v276
    %v278 = vmul.f32 1.0, %v277
    %v279 = vtanh.pop %v272
    %v280 = vmul.f32 %v278, %v192
    %282 = vrot.lane.b32.xlu0 %v279, 64
    %v283 = vpop.permute.xlu0 %282
    %v285 = vmul.f32 %v278, %v283
    %287 = vrot.lane.b32.xlu0 %v285, 32
    %v288 = vpop.permute.xlu0 %287
    %v290 = vadd.f32 %v280, %v288
    %v291 = vtanh.pop %v290
    %293 = vrot.lane.b32.xlu0 %v291, 64
    %v294 = vpop.permute.xlu0 %293
    %v296 = vmul.f32 %v278, %v294
    %298 = vrot.lane.b32.xlu0 %v296, 32
    %v299 = vpop.permute.xlu0 %298
    %s301 = scalar_lea.vmem [#allocation3], %s193
    %302 = vst.msk [vmem:[%s301] sm:$0xff] %vm199, %v299
  $region34: #{tpu_custom_call.1} parent=0 // loop_footer
    %s190 = sadd.s32 1, %s186
  $region35: #{tpu_custom_call.1} parent=0 // loop_footer_branch
    %185 = sbr.rel target = $region31
  $region36: #{tpu_custom_call.1} parent=0 // loop_exit
    _
  %v303 = vld [vmem:[%s1] sm:$0xff]
  %v304 = vld [vmem:[#allocation3] sm:$0xff]
  %v305 = vld [vmem:[#allocation3 + $0x8] sm:$0xff]
  %v306 = vld [vmem:[#allocation3 + $0x10] sm:$0xff]
  %v307 = vld [vmem:[#allocation3 + $0x18] sm:$0xff]
  %v308 = vld [vmem:[#allocation3 + $0x20] sm:$0xff]
  %v309 = vld [vmem:[#allocation3 + $0x28] sm:$0xff]
  %v310 = vld [vmem:[#allocation3 + $0x30] sm:$0xff]
  %v311 = vld [vmem:[#allocation3 + $0x38] sm:$0xff]
  %vm312 = vcmask 523264
  %v314 = vsel %vm312, %v303, 0
  %316 = vmatprep.subr.mxu0 0.0
  %317 = vmatpush1.msra.mxu0 0.0
  %318 = vmatprep.subr.mxu0 0.0
  %319 = vmatpush1.msra.mxu0 0.0
  %320 = vmatprep.subr.mxu0 0.0
  %321 = vmatpush1.msra.mxu0 0.0
  %322 = vmatprep.subr.mxu0 0.0
  %323 = vmatpush1.msra.mxu0 0.0
  %324 = vmatprep.subr.mxu0 0.0
  %325 = vmatpush1.msra.mxu0 0.0
  %326 = vmatprep.subr.mxu0 0.0
  %327 = vmatpush1.msra.mxu0 0.0
  %328 = vmatprep.subr.mxu0 0.0
  %329 = vmatpush1.msra.mxu0 0.0
  %330 = vmatprep.subr.mxu0 0.0
  %331 = vmatpush1.msra.mxu0 0.0
  %332 = vmatprep.subr.mxu0 0.0
  %333 = vmatpush1.msra.mxu0 %v311
  %334 = vmatprep.subr.mxu0 0.0
  %335 = vmatpush1.msra.mxu0 %v310
  %336 = vmatprep.subr.mxu0 0.0
  %337 = vmatpush1.msra.mxu0 %v309
  %338 = vmatprep.subr.mxu0 0.0
  %339 = vmatpush1.msra.mxu0 %v308
  %340 = vmatprep.subr.mxu0 0.0
  %341 = vmatpush1.msra.mxu0 %v307
  %342 = vmatprep.subr.mxu0 0.0
  %343 = vmatpush1.msra.mxu0 %v306
  %344 = vmatprep.subr.mxu0 0.0
  %345 = vmatpush1.msra.mxu0 %v305
  %346 = vmatprep.subr.mxu0 0.0
  %347 = vmatpush1.msra.mxu0 %v304
  %348 = vmatprep.subr.mxu0 0.0
  %349 = vmatpush2.msra.mxu0 0.0
  %350 = vmatprep.subr.mxu0 0.0
  %351 = vmatpush2.msra.mxu0 0.0
  %352 = vmatprep.subr.mxu0 0.0
  %353 = vmatpush2.msra.mxu0 0.0
  %354 = vmatprep.subr.mxu0 0.0
  %355 = vmatpush2.msra.mxu0 0.0
  %356 = vmatprep.subr.mxu0 0.0
  %357 = vmatpush2.msra.mxu0 0.0
  %358 = vmatprep.subr.mxu0 0.0
  %359 = vmatpush2.msra.mxu0 0.0
  %360 = vmatprep.subr.mxu0 0.0
  %361 = vmatpush2.msra.mxu0 0.0
  %362 = vmatprep.subr.mxu0 0.0
  %363 = vmatpush2.msra.mxu0 0.0
  %364 = vmatprep.subr.mxu0 0.0
  %365 = vmatpush2.msra.mxu0 0.0
  %366 = vmatprep.subr.mxu0 0.0
  %367 = vmatpush2.msra.mxu0 0.0
  %368 = vmatprep.subr.mxu0 0.0
  %369 = vmatpush2.msra.mxu0 0.0
  %370 = vmatprep.subr.mxu0 0.0
  %371 = vmatpush2.msra.mxu0 0.0
  %372 = vmatprep.subr.mxu0 0.0
  %373 = vmatpush2.msra.mxu0 0.0
  %374 = vmatprep.subr.mxu0 0.0
  %375 = vmatpush2.msra.mxu0 0.0
  %376 = vmatprep.subr.mxu0 0.0
  %377 = vmatpush2.msra.mxu0 0.0
  %378 = vmatprep.subr.mxu0 0.0
  %379 = vmatpush2.msra.mxu0 0.0
  %380 = vmatprep.mubr.f32.mxu0 0.0
  %381 = vmatmul.mubr.f32.gmra.mxu0 %v314
  %v382 = vpop.f32.mrf.mxu0
  %v383 = vadd.f32 0.0, %v382
  %v384 = vpop.f32.mrf.mxu0
  %385 = vdwg.mxu0
  %v386 = vld [vmem:[%s5] sm:$0xff]
  %v387 = vld [vmem:[%s5 + $0x8] sm:$0xff]
  %v388 = vld [vmem:[%s5 + $0x10] sm:$0xff]
  %v389 = vld [vmem:[%s5 + $0x18] sm:$0xff]
  %v390 = vld [vmem:[%s6] sm:$0x1]
  %v392 = vlaneseq
  %v393 = vshrl.u32 %v392, 7
  %v394 = vsub.s32 0, %v393
  %v395 = vrot.slane %v390, %v394
  %vm397 = vcmask 261120
  %v399 = vsel %vm397, %v383, 0
  %401 = vmatprep.subr.mxu0 0.0
  %402 = vmatpush1.msra.mxu0 0.0
  %403 = vmatprep.subr.mxu0 0.0
  %404 = vmatpush1.msra.mxu0 0.0
  %405 = vmatprep.subr.mxu0 0.0
  %406 = vmatpush1.msra.mxu0 0.0
  %407 = vmatprep.subr.mxu0 0.0
  %408 = vmatpush1.msra.mxu0 0.0
  %409 = vmatprep.subr.mxu0 0.0
  %410 = vmatpush1.msra.mxu0 0.0
  %411 = vmatprep.subr.mxu0 0.0
  %412 = vmatpush1.msra.mxu0 0.0
  %413 = vmatprep.subr.mxu0 0.0
  %414 = vmatpush1.msra.mxu0 0.0
  %415 = vmatprep.subr.mxu0 0.0
  %416 = vmatpush1.msra.mxu0 0.0
  %417 = vmatprep.subr.mxu0 0.0
  %418 = vmatpush1.msra.mxu0 0.0
  %419 = vmatprep.subr.mxu0 0.0
  %420 = vmatpush1.msra.mxu0 0.0
  %421 = vmatprep.subr.mxu0 0.0
  %422 = vmatpush1.msra.mxu0 0.0
  %423 = vmatprep.subr.mxu0 0.0
  %424 = vmatpush1.msra.mxu0 0.0
  %425 = vmatprep.subr.mxu0 0.0
  %426 = vmatpush1.msra.mxu0 %v389
  %427 = vmatprep.subr.mxu0 0.0
  %428 = vmatpush1.msra.mxu0 %v388
  %429 = vmatprep.subr.mxu0 0.0
  %430 = vmatpush1.msra.mxu0 %v387
  %431 = vmatprep.subr.mxu0 0.0
  %432 = vmatpush1.msra.mxu0 %v386
  %433 = vmatprep.subr.mxu0 0.0
  %434 = vmatpush2.msra.mxu0 0.0
  %435 = vmatprep.subr.mxu0 0.0
  %436 = vmatpush2.msra.mxu0 0.0
  %437 = vmatprep.subr.mxu0 0.0
  %438 = vmatpush2.msra.mxu0 0.0
  %439 = vmatprep.subr.mxu0 0.0
  %440 = vmatpush2.msra.mxu0 0.0
  %441 = vmatprep.subr.mxu0 0.0
  %442 = vmatpush2.msra.mxu0 0.0
  %443 = vmatprep.subr.mxu0 0.0
  %444 = vmatpush2.msra.mxu0 0.0
  %445 = vmatprep.subr.mxu0 0.0
  %446 = vmatpush2.msra.mxu0 0.0
  %447 = vmatprep.subr.mxu0 0.0
  %448 = vmatpush2.msra.mxu0 0.0
  %449 = vmatprep.subr.mxu0 0.0
  %450 = vmatpush2.msra.mxu0 0.0
  %451 = vmatprep.subr.mxu0 0.0
  %452 = vmatpush2.msra.mxu0 0.0
  %453 = vmatprep.subr.mxu0 0.0
  %454 = vmatpush2.msra.mxu0 0.0
  %455 = vmatprep.subr.mxu0 0.0
  %456 = vmatpush2.msra.mxu0 0.0
  %457 = vmatprep.subr.mxu0 0.0
  %458 = vmatpush2.msra.mxu0 0.0
  %459 = vmatprep.subr.mxu0 0.0
  %460 = vmatpush2.msra.mxu0 0.0
  %461 = vmatprep.subr.mxu0 0.0
  %462 = vmatpush2.msra.mxu0 0.0
  %463 = vmatprep.subr.mxu0 0.0
  %464 = vmatpush2.msra.mxu0 0.0
  %465 = vmatprep.mubr.f32.mxu0 0.0
  %466 = vmatmul.mubr.f32.gmra.mxu0 %v399
  %v467 = vpop.f32.mrf.mxu0
  %v468 = vadd.f32 %v395, %v467
  %v469 = vpop.f32.mrf.mxu0
  %470 = vdwg.mxu0
  %v471 = vtanh.pop %v468
  %vm472 = vcmask 31744
  %473 = vst.msk [vmem:[%s7] sm:$0xff] %vm472, %v471
  // Predicated region
  $region37: #{tpu_custom_call.1} parent=0 // pred_check
    _
  $region38: #{tpu_custom_call.1} parent=0 // pred_check_branch
    %475 = sbr.rel (0) target = $region40
  $region39: #{tpu_custom_call.1} parent=0 // pred_region
    _
  $region40: #{tpu_custom_call.1} parent=0 // pred_fallthru
    _
  // Predicated region
  $region41: #{tpu_custom_call.1} parent=0 // pred_check
    _
  $region42: #{tpu_custom_call.1} parent=0 // pred_check_branch
    %477 = sbr.rel (0) target = $region44
  $region43: #{tpu_custom_call.1} parent=0 // pred_region
    _
  $region44: #{tpu_custom_call.1} parent=0 // pred_fallthru
    _

</llo_original>
